<compile_context>
chip_gen: v6e
topology: v6e:2x2x1
jax: 0.10.0
libtpu: 0.0.40
codegen_flags: <defaults>
</compile_context>

<pallas_src>
import functools

import jax
import jax.numpy as jnp
from jax.experimental import pallas as pl
from jax.experimental.pallas import tpu as pltpu


def _round_up(x, m):
    return (x + m - 1) // m * m


# For an output row parity py (o = 2*i + py), the contributing taps are
# (padded-input-row-offset, kernel-row-index):
_PHASE_TAPS = {0: ((0, 3), (1, 1)), 1: ((1, 2), (2, 0))}


# ----------------------------- Pallas kernels ------------------------------ #

def _gemm_bias_kernel(p_ref, w_ref, b_ref, o_ref, *, apply_relu):
    """One (phase, M-tile) step: (TM, K)bf16 @ (K, Cpad)bf16 -> f32, + bias."""
    acc = jnp.dot(p_ref[0], w_ref[0], preferred_element_type=jnp.float32)
    acc = acc + b_ref[...]
    if apply_relu:                       # first_layer: fuse the ReLU epilogue
        acc = jnp.maximum(acc, 0.0)
    o_ref[0] = acc


def _stats_kernel(y_ref, s_ref, *, valid_rows, tile_m):
    """Accumulate per-channel sum (row 0) and sum of squares (row 1)."""
    @pl.when((pl.program_id(0) == 0) & (pl.program_id(1) == 0))
    def _():
        s_ref[...] = jnp.zeros_like(s_ref)

    x = y_ref[0]                                           # (TM, Cpad) f32
    if valid_rows is not None:                             # mask padded M rows
        row = (pl.program_id(1) * tile_m
               + jax.lax.broadcasted_iota(jnp.int32, (tile_m, 1), 0))
        x = jnp.where(row < valid_rows, x, 0.0)
    s = jnp.sum(x, axis=0, keepdims=True)
    ss = jnp.sum(x * x, axis=0, keepdims=True)
    s_ref[...] = s_ref[...] + jnp.concatenate([s, ss], axis=0)


def _bn_relu_dropout_kernel(y_ref, scale_ref, shift_ref, bits_ref, o_ref, *,
                            keep_threshold):
    """Fused affine (BN + folded dropout scale) + ReLU + dropout mask."""
    z = jnp.maximum(y_ref[0] * scale_ref[...] + shift_ref[...], 0.0)
    keep = bits_ref[0] >= jnp.uint32(keep_threshold)       # raw-bit threshold
    o_ref[0] = jnp.where(keep, z, 0.0)


# ------------------------------- wrappers ---------------------------------- #

def _conv_transpose_4s2p1_gemm(x_nhwc, weight, bias, *, apply_relu, tile_m):
    """Sub-pixel ConvTranspose2d(4, stride=2, padding=1) as 4 phase GEMMs.

    x_nhwc : (N, H, W, Cin)
    weight : (Cin, Cout, 4, 4)  (PyTorch ConvTranspose2d layout)
    bias   : (Cout,)
    Returns y_all (4, M_pad, Cpad) f32 (phase-major flat output) + geometry.
    """
    N, H, W, Cin = x_nhwc.shape
    cin_w, Cout, kH, kW = weight.shape
    assert (cin_w, kH, kW) == (Cin, 4, 4), "only k=4,s=2,p=1 is modeled"

    M = N * H * W
    K = 4 * Cin
    Cpad = _round_up(Cout, 128)                 # lane-dense output blocks
    tm = min(tile_m, _round_up(M, 16))
    M_pad = _round_up(M, tm)

    xb = x_nhwc.astype(jnp.bfloat16)            # bf16 GEMM operands
    xp = jnp.pad(xb, ((0, 0), (1, 1), (1, 1), (0, 0)))

    patch_list, w_list = [], []
    for py in (0, 1):
        for px in (0, 1):
            taps = [(dy, ky, dx, kx)
                    for (dy, ky) in _PHASE_TAPS[py]
                    for (dx, kx) in _PHASE_TAPS[px]]
            slabs = [xp[:, dy:dy + H, dx:dx + W, :] for (dy, _, dx, _) in taps]
            patch_list.append(jnp.stack(slabs, axis=3).reshape(M, K))
            w_list.append(jnp.stack([weight[:, :, ky, kx]
                                     for (_, ky, _, kx) in taps],
                                    axis=0).reshape(K, Cout))
    patches = jnp.stack(patch_list, axis=0)                       # (4, M, K) bf16
    w_all = jnp.stack(w_list, axis=0).astype(jnp.bfloat16)        # (4, K, Cout)

    if M_pad != M:
        patches = jnp.pad(patches, ((0, 0), (0, M_pad - M), (0, 0)))
    if Cpad != Cout:
        w_all = jnp.pad(w_all, ((0, 0), (0, 0), (0, Cpad - Cout)))
    b_all = jnp.pad(bias.astype(jnp.float32), (0, Cpad - Cout)).reshape(1, Cpad)

    cost = pl.CostEstimate(
        flops=2 * 4 * M_pad * K * Cpad,
        transcendentals=0,
        bytes_accessed=(patches.size * 2 + w_all.size * 2 + b_all.size * 4
                        + 4 * M_pad * Cpad * 4),
    )
    y_all = pl.pallas_call(
        functools.partial(_gemm_bias_kernel, apply_relu=apply_relu),
        out_shape=jax.ShapeDtypeStruct((4, M_pad, Cpad), jnp.float32),
        grid=(4, M_pad // tm),
        in_specs=[
            pl.BlockSpec((1, tm, K), lambda p, i: (p, i, 0)),
            pl.BlockSpec((1, K, Cpad), lambda p, i: (p, 0, 0)),
            pl.BlockSpec((1, Cpad), lambda p, i: (0, 0)),
        ],
        out_specs=pl.BlockSpec((1, tm, Cpad), lambda p, i: (p, i, 0)),
        compiler_params=pltpu.CompilerParams(
            dimension_semantics=("parallel", "parallel"),
            vmem_limit_bytes=32 * 1024 * 1024,
        ),
        cost_estimate=cost,
    )(patches, w_all, b_all)
    return y_all, (N, H, W, Cout, M, M_pad, Cpad, tm)


def _batch_stats(y_all, *, M, M_pad, Cpad, tm):
    """Tiled per-channel sum / sum-of-squares over the (4, M_pad, Cpad) slab."""
    valid = None if M_pad == M else M
    return pl.pallas_call(
        functools.partial(_stats_kernel, valid_rows=valid, tile_m=tm),
        out_shape=jax.ShapeDtypeStruct((2, Cpad), jnp.float32),
        grid=(4, M_pad // tm),
        in_specs=[pl.BlockSpec((1, tm, Cpad), lambda p, i: (p, i, 0))],
        out_specs=pl.BlockSpec((2, Cpad), lambda p, i: (0, 0)),
        compiler_params=pltpu.CompilerParams(
            dimension_semantics=("arbitrary", "arbitrary"),
            vmem_limit_bytes=32 * 1024 * 1024,
        ),
    )(y_all)


def _bn_relu_dropout(y_all, sums, gamma, beta, dropout_bits, *,
                     M, M_pad, Cpad, Cout, tm, eps, drop_p):
    # Tiny per-channel math in plain JAX (Cpad floats): single-sweep variance
    # E[x^2] - mean^2; fold gamma*inv_std and the dropout 1/(1-p) into one
    # per-channel scale/shift so the kernel does a single FMA + ReLU + select.
    count = 4.0 * M
    mean = sums[0] / count
    var = jnp.maximum(sums[1] / count - mean * mean, 0.0)
    inv_std = jax.lax.rsqrt(var + eps)
    g = jnp.pad(gamma.astype(jnp.float32), (0, Cpad - Cout))
    b = jnp.pad(beta.astype(jnp.float32), (0, Cpad - Cout))
    inv_keep = 1.0 / (1.0 - drop_p)
    scale = (g * inv_std * inv_keep).reshape(1, Cpad)
    shift = ((b - mean * g * inv_std) * inv_keep).reshape(1, Cpad)
    keep_threshold = int(round(drop_p * float(2 ** 32)))

    return pl.pallas_call(
        functools.partial(_bn_relu_dropout_kernel, keep_threshold=keep_threshold),
        out_shape=jax.ShapeDtypeStruct((4, M_pad, Cpad), jnp.float32),
        grid=(4, M_pad // tm),
        in_specs=[
            pl.BlockSpec((1, tm, Cpad), lambda p, i: (p, i, 0)),
            pl.BlockSpec((1, Cpad), lambda p, i: (0, 0)),
            pl.BlockSpec((1, Cpad), lambda p, i: (0, 0)),
            pl.BlockSpec((1, tm, Cpad), lambda p, i: (p, i, 0)),
        ],
        out_specs=pl.BlockSpec((1, tm, Cpad), lambda p, i: (p, i, 0)),
        compiler_params=pltpu.CompilerParams(
            dimension_semantics=("parallel", "parallel"),
            vmem_limit_bytes=32 * 1024 * 1024,
        ),
    )(y_all, scale, shift, dropout_bits)


def _phases_to_nhwc(y_all, *, N, H, W, M, Cout):
    y = y_all[:, :M, :Cout].reshape(2, 2, N, H, W, Cout)      # (py, px, n, i, j, c)
    y = y.transpose(2, 3, 0, 4, 1, 5).reshape(N, 2 * H, 2 * W, Cout)
    return y


def gan_up_block(x_nchw, params, *, first_layer=False, last_layer=False,
                 dropout_key=None, drop_p=0.2, eps=1e-5, tile_m=256):
    """Forward pass of GANUpBlock. Input/output NCHW (PyTorch convention).

    TODO(synk): for stacked blocks, keep activations NHWC between blocks and
    only convert at the model boundary to avoid per-layer transpose passes.
    """
    weight, bias, gamma, beta = params
    x_nhwc = jnp.transpose(x_nchw, (0, 2, 3, 1))

    y_all, (N, H, W, Cout, M, M_pad, Cpad, tm) = _conv_transpose_4s2p1_gemm(
        x_nhwc, weight, bias, apply_relu=bool(first_layer), tile_m=tile_m)

    if not (first_layer or last_layer):
        sums = _batch_stats(y_all, M=M, M_pad=M_pad, Cpad=Cpad, tm=tm)
        if dropout_key is None:
            dropout_key = jax.random.PRNGKey(0)
        bits = jax.random.bits(dropout_key, (4, M_pad, Cpad), dtype=jnp.uint32)
        y_all = _bn_relu_dropout(y_all, sums, gamma, beta, bits,
                                 M=M, M_pad=M_pad, Cpad=Cpad, Cout=Cout,
                                 tm=tm, eps=eps, drop_p=drop_p)

    out_nhwc = _phases_to_nhwc(y_all, N=N, H=H, W=W, M=M, Cout=Cout)
    return jnp.transpose(out_nhwc, (0, 3, 1, 2))


# -------------------------- pure-JAX reference ------------------------------ #

def _conv_transpose_ref_nchw(x, weight, bias, stride=2, padding=1):
    N, Cin, H, W = x.shape
    _, Cout, kH, kW = weight.shape
    OH = (H - 1) * stride - 2 * padding + kH
    OW = (W - 1) * stride - 2 * padding + kW
    x_up = jnp.zeros((N, Cin, (H - 1) * stride + 1, (W - 1) * stride + 1), x.dtype)
    x_up = x_up.at[:, :, ::stride, ::stride].set(x)
    ph, pw = kH - 1 - padding, kW - 1 - padding
    xp = jnp.pad(x_up, ((0, 0), (0, 0), (ph, ph), (pw, pw)))
    wf = weight[:, :, ::-1, ::-1]
    out = jnp.zeros((N, Cout, OH, OW), jnp.float32)
    for ky in range(kH):
        for kx in range(kW):
            out = out + jnp.einsum('nchw,cd->ndhw',
                                   xp[:, :, ky:ky + OH, kx:kx + OW],
                                   wf[:, :, ky, kx])
    return out + bias[None, :, None, None]


# --------------------------------- main ------------------------------------ #

if __name__ == "__main__":
    key = jax.random.PRNGKey(0)
    k_x, k_w, k_b, k_drop = jax.random.split(key, 4)

    N, Cin, H, W = 2, 8, 8, 8
    Cout = 8

    x = jax.random.normal(k_x, (N, Cin, H, W), jnp.float32)
    weight = jax.random.normal(k_w, (Cin, Cout, 4, 4), jnp.float32) * 0.1
    bias = jax.random.normal(k_b, (Cout,), jnp.float32) * 0.01
    gamma = jnp.ones((Cout,), jnp.float32)
    beta = jnp.zeros((Cout,), jnp.float32)
    params = (weight, bias, gamma, beta)

    # last layer: conv only — check against a pure-JAX reference (bf16 GEMM tol).
    out_last = jax.block_until_ready(gan_up_block(x, params, last_layer=True))
    assert out_last.shape == (N, Cout, 2 * H, 2 * W)
    ref = _conv_transpose_ref_nchw(x, weight, bias)
    err = float(jnp.max(jnp.abs(out_last - ref)))
    assert err < 0.1, f"conv transpose mismatch, max abs err {err}"

    # first layer: conv + fused ReLU.
    out_first = jax.block_until_ready(gan_up_block(x, params, first_layer=True))
    assert float(jnp.min(out_first)) >= 0.0

    # middle block: conv -> BN(batch stats) -> ReLU -> Dropout(0.2).
    out_mid = jax.block_until_ready(gan_up_block(x, params, dropout_key=k_drop))
    assert out_mid.shape == (N, Cout, 2 * H, 2 * W)

    print("KERNEL_OK")
</pallas_src>

<mosaic_0001>
module attributes {stable_mosaic.version = 11 : i64} {
  func.func @_gemm_bias_kernel(%arg0: i32, %arg1: i32, %arg2: memref<1x128x32xbf16, #tpu.memory_space<vmem>>, %arg3: memref<1x32x128xbf16, #tpu.memory_space<vmem>>, %arg4: memref<1x128xf32, #tpu.memory_space<vmem>>, %arg5: memref<1x128x128xf32, #tpu.memory_space<vmem>>) attributes {dimension_semantics = [#tpu.dimension_semantics<parallel>, #tpu.dimension_semantics<parallel>], iteration_bounds = array<i64: 4, 1>, scalar_prefetch = 0 : i64, scratch_operands = 0 : i64, tpu.core_type = #tpu.core_type<tc>, window_params = [{transform_indices = @transform_0, window_bounds = array<i64: 1, 128, 32>}, {transform_indices = @transform_1, window_bounds = array<i64: 1, 32, 128>}, {pipeline_mode = #tpu.pipeline_mode<synchronous>, transform_indices = @transform_2, window_bounds = array<i64: 1, 128>}, {transform_indices = @transform_3, window_bounds = array<i64: 1, 128, 128>}]} {
    %c0 = arith.constant 0 : index
    %c0_0 = arith.constant 0 : index
    %c0_1 = arith.constant 0 : index
    %0 = vector.load %arg2[%c0, %c0_0, %c0_1] : memref<1x128x32xbf16, #tpu.memory_space<vmem>>, vector<1x128x32xbf16>
    %1 = vector.shape_cast %0 : vector<1x128x32xbf16> to vector<128x32xbf16>
    %c0_2 = arith.constant 0 : index
    %c0_3 = arith.constant 0 : index
    %c0_4 = arith.constant 0 : index
    %2 = vector.load %arg3[%c0_2, %c0_3, %c0_4] : memref<1x32x128xbf16, #tpu.memory_space<vmem>>, vector<1x32x128xbf16>
    %3 = vector.shape_cast %2 : vector<1x32x128xbf16> to vector<32x128xbf16>
    %cst = arith.constant dense<0.000000e+00> : vector<128x128xf32>
    %4 = tpu.matmul %1, %3, %cst {dimension_numbers = #tpu.dot_dimension_numbers<[1], [0], [0], [1], [0, 0, 1, 1], [], []>} : vector<128x32xbf16>, vector<32x128xbf16>, vector<128x128xf32> -> vector<128x128xf32>
    %c0_5 = arith.constant 0 : index
    %c0_6 = arith.constant 0 : index
    %5 = vector.load %arg4[%c0_5, %c0_6] : memref<1x128xf32, #tpu.memory_space<vmem>>, vector<1x128xf32>
    %6 = vector.broadcast %5 : vector<1x128xf32> to vector<128x128xf32>
    %7 = arith.addf %4, %6 : vector<128x128xf32>
    %c0_7 = arith.constant 0 : index
    %c0_8 = arith.constant 0 : index
    %c0_9 = arith.constant 0 : index
    %8 = vector.load %arg5[%c0_7, %c0_8, %c0_9] : memref<1x128x128xf32, #tpu.memory_space<vmem>>, vector<1x128x128xf32>
    %9 = vector.shape_cast %8 : vector<1x128x128xf32> to vector<128x128xf32>
    %10 = vector.shape_cast %7 : vector<128x128xf32> to vector<1x128x128xf32>
    tpu.vector_store %arg5[%c0_7, %c0_8, %c0_9], %10 {strides = array<i32>} : memref<1x128x128xf32, #tpu.memory_space<vmem>>, vector<1x128x128xf32>,
    return
  }
  func.func @transform_0(%arg0: i32, %arg1: i32) -> (i32, i32, i32) {
    %c0_i32 = arith.constant 0 : i32
    %c0_i32_0 = arith.constant 0 : i32
    return %arg0, %arg1, %c0_i32 : i32, i32, i32
  }
  func.func @transform_1(%arg0: i32, %arg1: i32) -> (i32, i32, i32) {
    %c0_i32 = arith.constant 0 : i32
    %c0_i32_0 = arith.constant 0 : i32
    %c0_i32_1 = arith.constant 0 : i32
    return %arg0, %c0_i32, %c0_i32_0 : i32, i32, i32
  }
  func.func @transform_2(%arg0: i32, %arg1: i32) -> (i32, i32) {
    %c0_i32 = arith.constant 0 : i32
    %c0_i32_0 = arith.constant 0 : i32
    %c0_i32_1 = arith.constant 0 : i32
    return %c0_i32, %c0_i32_0 : i32, i32
  }
  func.func @transform_3(%arg0: i32, %arg1: i32) -> (i32, i32, i32) {
    %c0_i32 = arith.constant 0 : i32
    %c0_i32_0 = arith.constant 0 : i32
    return %arg0, %arg1, %c0_i32 : i32, i32, i32
  }
}

</mosaic_0001>

<llo_original>
// kernel: tpu_custom_call.1
$region0: #{tpu_custom_call.1}
  #allocation0 [shape = 'u32[]', space=smem, size = 0x4, offset = 0x4, fixed_abs, tag = 'smem constant byte address 0x4 - core index']
  #allocation1 [shape = 'u32[144,128]{1,0:T(1,128)}', space=vmem, size = 0x12000, scoped, tag = 'internal scratch']
  %s0 = inlined_call_operand.vmem [shape: bf16[4,128,32], index: 0, kind: input, shape index: {}]
  %s1 = inlined_call_operand.vmem [shape: bf16[4,32,128], index: 1, kind: input, shape index: {}]
  %s2 = inlined_call_operand.vmem [shape: f32[1,128], index: 2, kind: input, shape index: {}]
  %s3 = inlined_call_operand.hbm [shape: f32[4,128,128], index: 3, kind: output, shape index: {}]
  %s4 = sld [smem:[#allocation0]]
  $region45: #{tpu_custom_call.1} parent=0
    _
  %s6 = ssub.s32 1, %s4
  %s7 = scalar_select 0, %s6, %s4
  $region1: #{tpu_custom_call.1} parent=0
    #allocation2 [shape = 'u8[131072]{0}', space=vmem, size = 0x20000, scoped, tag = 'output window, operand 0']
    #allocation3 [shape = 's32[2]{0}', space=sflag, size = 0x8, scoped, tag = 'scoped memory for tpu_custom_call.1']
    %8 = vsyncpa [#allocation3], 0
    %s9 = scalar_lea.sflag [#allocation3], 1
    %10 = vsyncpa %s9, 0
    loop: start=0, step=1, limit=6
    $region2: #{tpu_custom_call.1} parent=1 // loop_pre_header
      _
    $region3: #{tpu_custom_call.1} parent=1 // loop_header
      %s12 = sphi 0, %s16
      %p13 = scmp.ge.s32.totalorder %s12, 6
      %s19 = sphi 0, %s31
      %s20 = sphi 0, %s27
      %s21 = sphi 0, %s19
      %s22 = sphi 0, %s20
      %s23 = sphi 0, %s21
      %s24 = sphi 0, %s22
      %s36 = sphi 0, %s38
      %s39 = sphi 0, %s36
      %s40 = sphi 0, %s39
      %s56 = sphi 0, %s40
      %s62 = sphi 0, %s64
      %s65 = sphi 0, %s62
      %s66 = sphi 0, %s65
      %s82 = sphi 0, %s66
      %s86 = sphi 0, %s86
      %s88 = sphi 0, %s86
      %s89 = sphi 0, %s88
      %s103 = sphi 0, %s89
      %s111 = sphi 0, %s113
      %s114 = sphi 0, %s111
      %s115 = sphi 0, %s114
      %s131 = sphi 0, %s115
    $region4: #{tpu_custom_call.1} parent=1 // loop_header_branch
      %15 = sbr.rel (%p13) target = $region8
    $region5: #{tpu_custom_call.1} parent=1 // loop_body
      %s17 = ssub.s32 %s12, 1
      %s18 = ssub.s32 %s12, 2
      %s25 = sadd.s32 1, %s20
      %p26 = scmp.ge.s32.totalorder %s25, 1
      %s27 = scalar_select %p26, 0, %s25
      %s28 = sadd.s32 1, %s19
      %s29 = scalar_select %p26, %s28, %s19
      %p30 = scmp.ge.s32.totalorder %s29, 4
      %s31 = scalar_select %p30, 0, %s29
      %s32 = ssub.s32 %s19, %s31
      %s33 = ssub.s32 %s20, %s27
      %s34 = sor.u32 %s32, %s33
      %p35 = scmp.eq.s32.totalorder %s34, 0
      %s37 = sadd.s32 %s36, 1
      %s38 = scalar_select %p35, %s36, %s37
      %p41 = pneg %p35
      %p42 = scmp.eq.s32.totalorder %s12, 3
      %p43 = por %p41, %p42
      %p44 = scmp.ne.s32.totalorder %s36, %s39
      %p45 = scmp.eq.s32.totalorder %s12, 0
      %p46 = por %p44, %p45
      %p47 = scmp.ne.s32.totalorder %s36, %s39
      %p48 = scmp.eq.s32.totalorder %s17, 3
      %p49 = por %p47, %p48
      %p50 = scmp.ne.s32.totalorder %s39, %s40
      %p51 = scmp.eq.s32.totalorder %s17, 0
      %p52 = por %p50, %p51
      %p53 = scmp.ne.s32.totalorder %s39, %s40
      %p54 = scmp.eq.s32.totalorder %s18, 3
      %p55 = por %p53, %p54
      %p57 = scmp.ne.s32.totalorder %s40, %s56
      %p58 = scmp.eq.s32.totalorder %s18, 0
      %p59 = por %p57, %p58
      %s60 = ssub.s32 %s19, %s31
      %p61 = scmp.eq.s32.totalorder %s60, 0
      %s63 = sadd.s32 %s62, 1
      %s64 = scalar_select %p61, %s62, %s63
      %p67 = pneg %p61
      %p68 = scmp.eq.s32.totalorder %s12, 3
      %p69 = por %p67, %p68
      %p70 = scmp.ne.s32.totalorder %s62, %s65
      %p71 = scmp.eq.s32.totalorder %s12, 0
      %p72 = por %p70, %p71
      %p73 = scmp.ne.s32.totalorder %s62, %s65
      %p74 = scmp.eq.s32.totalorder %s17, 3
      %p75 = por %p73, %p74
      %p76 = scmp.ne.s32.totalorder %s65, %s66
      %p77 = scmp.eq.s32.totalorder %s17, 0
      %p78 = por %p76, %p77
      %p79 = scmp.ne.s32.totalorder %s65, %s66
      %p80 = scmp.eq.s32.totalorder %s18, 3
      %p81 = por %p79, %p80
      %p83 = scmp.ne.s32.totalorder %s66, %s82
      %p84 = scmp.eq.s32.totalorder %s18, 0
      %p85 = por %p83, %p84
      %s87 = sadd.s32 %s86, 1
      %p90 = scmp.eq.s32.totalorder %s12, 3
      %p91 = scmp.ne.s32.totalorder %s86, %s88
      %p92 = scmp.eq.s32.totalorder %s12, 0
      %p93 = por %p91, %p92
      %p94 = scmp.ne.s32.totalorder %s86, %s88
      %p95 = scmp.eq.s32.totalorder %s17, 3
      %p96 = por %p94, %p95
      %p97 = scmp.ne.s32.totalorder %s88, %s89
      %p98 = scmp.eq.s32.totalorder %s17, 0
      %p99 = por %p97, %p98
      %p100 = scmp.ne.s32.totalorder %s88, %s89
      %p101 = scmp.eq.s32.totalorder %s18, 3
      %p102 = por %p100, %p101
      %p104 = scmp.ne.s32.totalorder %s89, %s103
      %p105 = scmp.eq.s32.totalorder %s18, 0
      %p106 = por %p104, %p105
      %s107 = ssub.s32 %s19, %s31
      %s108 = ssub.s32 %s20, %s27
      %s109 = sor.u32 %s107, %s108
      %p110 = scmp.eq.s32.totalorder %s109, 0
      %s112 = sadd.s32 %s111, 1
      %s113 = scalar_select %p110, %s111, %s112
      %p116 = pneg %p110
      %p117 = scmp.eq.s32.totalorder %s12, 3
      %p118 = por %p116, %p117
      %p119 = scmp.ne.s32.totalorder %s111, %s114
      %p120 = scmp.eq.s32.totalorder %s12, 0
      %p121 = por %p119, %p120
      %p122 = scmp.ne.s32.totalorder %s111, %s114
      %p123 = scmp.eq.s32.totalorder %s17, 3
      %p124 = por %p122, %p123
      %p125 = scmp.ne.s32.totalorder %s114, %s115
      %p126 = scmp.eq.s32.totalorder %s17, 0
      %p127 = por %p125, %p126
      %p128 = scmp.ne.s32.totalorder %s114, %s115
      %p129 = scmp.eq.s32.totalorder %s18, 3
      %p130 = por %p128, %p129
      %p132 = scmp.ne.s32.totalorder %s115, %s131
      %p133 = scmp.eq.s32.totalorder %s18, 0
      %p134 = por %p132, %p133
      %p135 = scmp.le.s32.totalorder 1, %s12
      %p136 = scmp.lt.s32.totalorder %s12, 5
      %p137 = pnand %p135, %p136
      %p138 = pneg %p137
      // Predicated region
      $region9: #{tpu_custom_call.1} parent=5 // pred_check
        _
      $region10: #{tpu_custom_call.1} parent=5 // pred_check_branch
        %140 = sbr.rel (%p137) target = $region12
      $region11: #{tpu_custom_call.1} parent=5 // pred_region
        %s141 = ssub.s32 %s12, 1
        // Predicated region
        $region13: #{tpu_custom_call.1} parent=11 // pred_check
          %p142 = pneg %p99
        $region14: #{tpu_custom_call.1} parent=11 // pred_check_branch
          %144 = sbr.rel (%p142) target = $region16
        $region15: #{tpu_custom_call.1} parent=11 // pred_region
          _
        $region16: #{tpu_custom_call.1} parent=11 // pred_fallthru
          _
      $region12: #{tpu_custom_call.1} parent=5 // pred_fallthru
        _
      %p145 = scmp.lt.s32.totalorder %s12, 4
      // Predicated region
      $region17: #{tpu_custom_call.1} parent=5 // pred_check
        %p146 = pneg %p145
      $region18: #{tpu_custom_call.1} parent=5 // pred_check_branch
        %148 = sbr.rel (%p146) target = $region20
      $region19: #{tpu_custom_call.1} parent=5 // pred_region
        // Predicated region
        $region21: #{tpu_custom_call.1} parent=19 // pred_check
          %p149 = pneg %p46
        $region22: #{tpu_custom_call.1} parent=19 // pred_check_branch
          %151 = sbr.rel (%p149) target = $region24
        $region23: #{tpu_custom_call.1} parent=19 // pred_region
          %s152 = smul.u32 16, %s20
          %p153 = scmp.lt.s32.totalorder %s19, 3
          %s154 = scalar_select %p153, %s19, 3
          %p155 = scmp.lt.s32.totalorder %s152, 15
          %s156 = scalar_select %p155, %s152, 15
          %s157 = smul.addr %s154, 16
          %s158 = sadd.s32 %s156, %s157
          %s159 = smul.addr %s158, 4
          %s160 = scalar_lea.vmem %s0, %s159
          %s161 = smul.u32 16, %s20
        $region24: #{tpu_custom_call.1} parent=19 // pred_fallthru
          _
        // Predicated region
        $region25: #{tpu_custom_call.1} parent=19 // pred_check
          %p162 = pneg %p72
        $region26: #{tpu_custom_call.1} parent=19 // pred_check_branch
          %164 = sbr.rel (%p162) target = $region28
        $region27: #{tpu_custom_call.1} parent=19 // pred_region
          %p165 = scmp.lt.s32.totalorder %s19, 3
          %s166 = scalar_select %p165, %s19, 3
          %s167 = smul.addr %s166, 4
          %s168 = smul.addr %s167, 4
          %s169 = scalar_lea.vmem %s1, %s168
        $region28: #{tpu_custom_call.1} parent=19 // pred_fallthru
          _
      $region20: #{tpu_custom_call.1} parent=5 // pred_fallthru
        _
      %p170 = scmp.le.s32.totalorder 1, %s12
      %p171 = scmp.lt.s32.totalorder %s12, 5
      %p172 = pnand %p170, %p171
      %p173 = pneg %p172
      // Predicated region
      $region29: #{tpu_custom_call.1} parent=5 // pred_check
        _
      $region30: #{tpu_custom_call.1} parent=5 // pred_check_branch
        %175 = sbr.rel (%p172) target = $region32
      $region31: #{tpu_custom_call.1} parent=5 // pred_region
        %s176 = ssub.s32 %s12, 1
        %s177 = smul.u32 16, %s22
        %p178 = scmp.lt.s32.totalorder %s21, 3
        %s179 = scalar_select %p178, %s21, 3
        %p180 = scmp.lt.s32.totalorder %s177, 15
        %s181 = scalar_select %p180, %s177, 15
        %s182 = smul.addr %s179, 16
        %s183 = sadd.s32 %s181, %s182
        %s184 = smul.addr %s183, 4
        %s185 = scalar_lea.vmem %s0, %s184
        %p186 = pneg %p52
        %p187 = pneg %p49
        %p188 = scmp.lt.s32.totalorder %s21, 3
        %s189 = scalar_select %p188, %s21, 3
        %s190 = smul.addr %s189, 4
        %s191 = smul.addr %s190, 4
        %s192 = scalar_lea.vmem %s1, %s191
        %p193 = pneg %p78
        %p194 = pneg %p75
        %p195 = pneg %p99
        %p196 = pneg %p96
        %p197 = pneg %p127
        %p198 = pneg %p124
        %s199 = sand.u32 %s114, 1
        %s200 = scalar_lea.sflag [#allocation3], %s199
        %s201 = sand.u32 %s114, 1
        %s202 = smul.addr %s201, 128
        %s203 = scalar_lea.vmem [#allocation2], %s202
        %s204 = smul.u32 16, %s22
        %p205 = scmp.lt.s32.totalorder %s21, 3
        %s206 = scalar_select %p205, %s21, 3
        %p207 = scmp.lt.s32.totalorder %s204, 15
        %s208 = scalar_select %p207, %s204, 15
        %s209 = smul.addr %s206, 16
        %s210 = sadd.s32 %s208, %s209
        %s211 = smul.addr %s210, 4
        %s212 = scalar_lea.vmem %s0, %s211
        %s213 = smul.u32 16, %s22
        %p214 = scmp.lt.s32.totalorder %s21, 3
        %s215 = scalar_select %p214, %s21, 3
        %s216 = smul.addr %s215, 4
        %s217 = smul.addr %s216, 4
        %s218 = scalar_lea.vmem %s1, %s217
        %s219 = smul.u32 16, %s22
        %v221 = vld [vmem:[%s212] sm:$0xf]
        %v222 = vld [vmem:[%s212 + $0x4] sm:$0xf]
        %v223 = vld [vmem:[%s212 + $0x8] sm:$0xf]
        %v224 = vld [vmem:[%s212 + $0xc] sm:$0xf]
        %v225 = vld [vmem:[%s212 + $0x10] sm:$0xf]
        %v226 = vld [vmem:[%s212 + $0x14] sm:$0xf]
        %v227 = vld [vmem:[%s212 + $0x18] sm:$0xf]
        %v228 = vld [vmem:[%s212 + $0x1c] sm:$0xf]
        %v229 = vld [vmem:[%s212 + $0x20] sm:$0xf]
        %v230 = vld [vmem:[%s212 + $0x24] sm:$0xf]
        %v231 = vld [vmem:[%s212 + $0x28] sm:$0xf]
        %v232 = vld [vmem:[%s212 + $0x2c] sm:$0xf]
        %v233 = vld [vmem:[%s212 + $0x30] sm:$0xf]
        %v234 = vld [vmem:[%s212 + $0x34] sm:$0xf]
        %v235 = vld [vmem:[%s212 + $0x38] sm:$0xf]
        %v236 = vld [vmem:[%s212 + $0x3c] sm:$0xf]
        %v237 = vld [vmem:[%s218] sm:$0xf]
        %v238 = vld [vmem:[%s218 + $0x4] sm:$0xf]
        %v239 = vld [vmem:[%s218 + $0x8] sm:$0xf]
        %v240 = vld [vmem:[%s218 + $0xc] sm:$0xf]
        %v241 = vld [vmem:[%s2] sm:$0x1]
        %v243 = vlaneseq
        %v244 = vshrl.u32 %v243, 7
        %v245 = vsub.s32 0, %v244
        %v246 = vrot.slane %v241, %v245
        %v264 = vunpack.c.l.b16 %v221
        %v265 = vunpack.c.l.b16 %v222
        %v266 = vunpack.c.l.b16 %v223
        %v267 = vunpack.c.l.b16 %v224
        %v268 = vunpack.c.l.b16 %v225
        %v269 = vunpack.c.l.b16 %v226
        %v270 = vunpack.c.l.b16 %v227
        %v271 = vunpack.c.l.b16 %v228
        %v272 = vunpack.c.l.b16 %v229
        %v273 = vunpack.c.l.b16 %v230
        %v274 = vunpack.c.l.b16 %v231
        %v275 = vunpack.c.l.b16 %v232
        %v276 = vunpack.c.l.b16 %v233
        %v277 = vunpack.c.l.b16 %v234
        %v278 = vunpack.c.l.b16 %v235
        %v279 = vunpack.c.l.b16 %v236
        %v280 = vpack.c.b16 %v265, %v264
        %v281 = vpack.c.b16 %v267, %v266
        %v282 = vpack.c.b16 %v269, %v268
        %v283 = vpack.c.b16 %v271, %v270
        %v284 = vpack.c.b16 %v273, %v272
        %v285 = vpack.c.b16 %v275, %v274
        %v286 = vpack.c.b16 %v277, %v276
        %v287 = vpack.c.b16 %v279, %v278
        %v292 = vunpack.c.l.b16 %v237
        %v293 = vunpack.c.l.b16 %v238
        %v294 = vunpack.c.l.b16 %v239
        %v295 = vunpack.c.l.b16 %v240
        %v296 = vpack.c.b16 %v293, %v292
        %v297 = vpack.c.b16 %v295, %v294
        %vm300 = vcmask 261120
        %v302 = vsel %vm300, %v280, 0
        %v305 = vsel %vm300, %v281, 0
        %v308 = vsel %vm300, %v282, 0
        %v311 = vsel %vm300, %v283, 0
        %v314 = vsel %vm300, %v284, 0
        %v317 = vsel %vm300, %v285, 0
        %v320 = vsel %vm300, %v286, 0
        %v323 = vsel %vm300, %v287, 0
        %325 = vmatprep.subr.bf16.mxu0 0
        %326 = vmatpush1.bf16.msra.mxu0 0
        %327 = vmatprep.subr.bf16.mxu0 0
        %328 = vmatpush1.bf16.msra.mxu0 0
        %329 = vmatprep.subr.bf16.mxu0 0
        %330 = vmatpush1.bf16.msra.mxu0 0
        %331 = vmatprep.subr.bf16.mxu0 0
        %332 = vmatpush1.bf16.msra.mxu0 0
        %333 = vmatprep.subr.bf16.mxu0 0
        %334 = vmatpush1.bf16.msra.mxu0 0
        %335 = vmatprep.subr.bf16.mxu0 0
        %336 = vmatpush1.bf16.msra.mxu0 0
        %337 = vmatprep.subr.bf16.mxu0 0
        %338 = vmatpush1.bf16.msra.mxu0 %v297
        %339 = vmatprep.subr.bf16.mxu0 0
        %340 = vmatpush1.bf16.msra.mxu0 %v296
        %341 = vmatprep.subr.bf16.mxu0 0
        %342 = vmatpush2.bf16.msra.mxu0 0
        %343 = vmatprep.subr.bf16.mxu0 0
        %344 = vmatpush2.bf16.msra.mxu0 0
        %345 = vmatprep.subr.bf16.mxu0 0
        %346 = vmatpush2.bf16.msra.mxu0 0
        %347 = vmatprep.subr.bf16.mxu0 0
        %348 = vmatpush2.bf16.msra.mxu0 0
        %349 = vmatprep.subr.bf16.mxu0 0
        %350 = vmatpush2.bf16.msra.mxu0 0
        %351 = vmatprep.subr.bf16.mxu0 0
        %352 = vmatpush2.bf16.msra.mxu0 0
        %353 = vmatprep.subr.bf16.mxu0 0
        %354 = vmatpush2.bf16.msra.mxu0 0
        %355 = vmatprep.subr.bf16.mxu0 0
        %356 = vmatpush2.bf16.msra.mxu0 0
        %357 = vmatprep.mubr.bf16.mxu0 0
        %358 = vmatmul.mubr.bf16.gmra.mxu0 %v302
        %v359 = vpop.f32.mrf.mxu0
        %v360 = vadd.f32 %v246, %v359
        %v361 = vpop.f32.mrf.mxu0
        %v362 = vpop.f32.mrf.mxu0
        %v363 = vadd.f32 %v246, %v362
        %v364 = vpop.f32.mrf.mxu0
        %365 = vmatprep.mubr.bf16.mxu0 0
        %366 = vmatmul.mubr.bf16.gmra.mxu0 %v305
        %v367 = vpop.f32.mrf.mxu0
        %v368 = vadd.f32 %v246, %v367
        %v369 = vpop.f32.mrf.mxu0
        %v370 = vpop.f32.mrf.mxu0
        %v371 = vadd.f32 %v246, %v370
        %v372 = vpop.f32.mrf.mxu0
        %373 = vmatprep.mubr.bf16.mxu0 0
        %374 = vmatmul.mubr.bf16.gmra.mxu0 %v308
        %v375 = vpop.f32.mrf.mxu0
        %v376 = vadd.f32 %v246, %v375
        %v377 = vpop.f32.mrf.mxu0
        %v378 = vpop.f32.mrf.mxu0
        %v379 = vadd.f32 %v246, %v378
        %v380 = vpop.f32.mrf.mxu0
        %381 = vmatprep.mubr.bf16.mxu0 0
        %382 = vmatmul.mubr.bf16.gmra.mxu0 %v311
        %v383 = vpop.f32.mrf.mxu0
        %v384 = vadd.f32 %v246, %v383
        %v385 = vpop.f32.mrf.mxu0
        %v386 = vpop.f32.mrf.mxu0
        %v387 = vadd.f32 %v246, %v386
        %v388 = vpop.f32.mrf.mxu0
        %389 = vmatprep.mubr.bf16.mxu0 0
        %390 = vmatmul.mubr.bf16.gmra.mxu0 %v314
        %v391 = vpop.f32.mrf.mxu0
        %v392 = vadd.f32 %v246, %v391
        %v393 = vpop.f32.mrf.mxu0
        %v394 = vpop.f32.mrf.mxu0
        %v395 = vadd.f32 %v246, %v394
        %v396 = vpop.f32.mrf.mxu0
        %397 = vmatprep.mubr.bf16.mxu0 0
        %398 = vmatmul.mubr.bf16.gmra.mxu0 %v317
        %v399 = vpop.f32.mrf.mxu0
        %v400 = vadd.f32 %v246, %v399
        %v401 = vpop.f32.mrf.mxu0
        %v402 = vpop.f32.mrf.mxu0
        %v403 = vadd.f32 %v246, %v402
        %v404 = vpop.f32.mrf.mxu0
        %405 = vmatprep.mubr.bf16.mxu0 0
        %406 = vmatmul.mubr.bf16.gmra.mxu0 %v320
        %v407 = vpop.f32.mrf.mxu0
        %v408 = vadd.f32 %v246, %v407
        %v409 = vpop.f32.mrf.mxu0
        %v410 = vpop.f32.mrf.mxu0
        %v411 = vadd.f32 %v246, %v410
        %v412 = vpop.f32.mrf.mxu0
        %413 = vmatprep.mubr.bf16.mxu0 0
        %414 = vmatmul.mubr.bf16.gmra.mxu0 %v323
        %v415 = vpop.f32.mrf.mxu0
        %v416 = vadd.f32 %v246, %v415
        %v417 = vpop.f32.mrf.mxu0
        %v418 = vpop.f32.mrf.mxu0
        %v419 = vadd.f32 %v246, %v418
        %v420 = vpop.f32.mrf.mxu0
        %421 = vdwg.mxu0
        %422 = vst [vmem:[%s203] sm:$0xff] %v360
        %423 = vst [vmem:[%s203 + $0x8] sm:$0xff] %v363
        %424 = vst [vmem:[%s203 + $0x10] sm:$0xff] %v368
        %425 = vst [vmem:[%s203 + $0x18] sm:$0xff] %v371
        %426 = vst [vmem:[%s203 + $0x20] sm:$0xff] %v376
        %427 = vst [vmem:[%s203 + $0x28] sm:$0xff] %v379
        %428 = vst [vmem:[%s203 + $0x30] sm:$0xff] %v384
        %429 = vst [vmem:[%s203 + $0x38] sm:$0xff] %v387
        %430 = vst [vmem:[%s203 + $0x40] sm:$0xff] %v392
        %431 = vst [vmem:[%s203 + $0x48] sm:$0xff] %v395
        %432 = vst [vmem:[%s203 + $0x50] sm:$0xff] %v400
        %433 = vst [vmem:[%s203 + $0x58] sm:$0xff] %v403
        %434 = vst [vmem:[%s203 + $0x60] sm:$0xff] %v408
        %435 = vst [vmem:[%s203 + $0x68] sm:$0xff] %v411
        %436 = vst [vmem:[%s203 + $0x70] sm:$0xff] %v416
        %437 = vst [vmem:[%s203 + $0x78] sm:$0xff] %v419
        %s438 = sand.u32 %s114, 1
        %s439 = scalar_lea.sflag [#allocation3], %s438
        %s440 = sand.u32 %s114, 1
        %s441 = smul.addr %s440, 128
        %s442 = scalar_lea.vmem [#allocation2], %s441
        // Predicated region
        $region33: #{tpu_custom_call.1} parent=31 // pred_check
          %p443 = pneg %p124
        $region34: #{tpu_custom_call.1} parent=31 // pred_check_branch
          %445 = sbr.rel (%p443) target = $region36
        $region35: #{tpu_custom_call.1} parent=31 // pred_region
          %s446 = smul.u32 16, %s22
          %s448 = ssub.s32 2048, 2048
          %449 = vsyncadd %s439, %s448
          %s450 = smul.addr %s21, 16
          %s451 = sadd.s32 %s446, %s450
          %s452 = smul.addr %s451, 128
          %s453 = scalar_lea.hbm %s3, %s452
          %s454 = sshll.u32 %s442, 4
          %s455 = int_to_ptr.vmem [resolvable:$true] %s454
          %460 = dma.vmem_to_hbm [thread:$0]  %s455, 2048, %s453, %s439, 128, 128, 8
        $region36: #{tpu_custom_call.1} parent=31 // pred_fallthru
          _
      $region32: #{tpu_custom_call.1} parent=5 // pred_fallthru
        _
      %p461 = scmp.le.s32.totalorder 2, %s12
      // Predicated region
      $region37: #{tpu_custom_call.1} parent=5 // pred_check
        %p462 = pneg %p461
      $region38: #{tpu_custom_call.1} parent=5 // pred_check_branch
        %464 = sbr.rel (%p462) target = $region40
      $region39: #{tpu_custom_call.1} parent=5 // pred_region
        %s465 = ssub.s32 %s12, 2
        // Predicated region
        $region41: #{tpu_custom_call.1} parent=39 // pred_check
          %p466 = pneg %p130
        $region42: #{tpu_custom_call.1} parent=39 // pred_check_branch
          %468 = sbr.rel (%p466) target = $region44
        $region43: #{tpu_custom_call.1} parent=39 // pred_region
          %s469 = sand.u32 %s115, 1
          %s470 = scalar_lea.sflag [#allocation3], %s469
          %s471 = sand.u32 %s115, 1
          %s472 = smul.addr %s471, 128
          %s473 = scalar_lea.vmem [#allocation2], %s472
          %474 = dma.done %s470, 2048
        $region44: #{tpu_custom_call.1} parent=39 // pred_fallthru
          _
      $region40: #{tpu_custom_call.1} parent=5 // pred_fallthru
        _
    $region6: #{tpu_custom_call.1} parent=1 // loop_footer
      %s16 = sadd.s32 1, %s12
    $region7: #{tpu_custom_call.1} parent=1 // loop_footer_branch
      %11 = sbr.rel target = $region3
    $region8: #{tpu_custom_call.1} parent=1 // loop_exit
      _
    %475 = vsyncpa [#allocation3], 1
    %s476 = scalar_lea.sflag [#allocation3], 1
    %477 = vsyncpa %s476, 1

</llo_original>
